<compile_context>
chip_gen: v7x
topology: tpu7x:2x2x1
jax: 0.10.0
libtpu: 0.0.40
codegen_flags: <defaults>
</compile_context>

<pallas_src>
import functools

import jax
import jax.numpy as jnp
from jax import lax
from jax.experimental import pallas as pl
from jax.experimental.pallas import tpu as pltpu

_LANE = 128
_NSPLIT = 2                        # leading "parallel" grid axis (2 TCs on v7x)
_TARGET_BLOCK_ELEMS = 128 * 1024   # ~512 KiB per f32 temporary per block


def _pool3(x, op, pad, taps):
    """Separable 3x3 pool, stride 1, 'ignore padding' semantics.

    `taps` is ((axis, offset, valid_mask) * 4): the two row taps first, then
    the two column taps.  Out-of-range neighbours are replaced by `pad`
    (+inf for min-pool, -inf for max-pool) so they never win, which matches
    torch.nn.functional.max_pool2d with padding=1.
    """
    def tap(arr, axis, offset, valid):
        n = arr.shape[axis]
        rolled = pltpu.roll(arr, (-offset) % n, axis)
        return jnp.where(valid, rolled, pad)

    (a0, o0, m0), (a1, o1, m1), (a2, o2, m2), (a3, o3, m3) = taps
    r = op(op(x, tap(x, a0, o0, m0)), tap(x, a1, o1, m1))
    return op(op(r, tap(r, a2, o2, m2)), tap(r, a3, o3, m3))


def _dice_sums_kernel(inp_ref, tgt_ref, si_ref, sx_ref, st_ref, *,
                      with_logits, H, W, n_planes, tb, steps_per_core,
                      flat, needs_plane_mask):
    c = pl.program_id(0)   # core-split axis ("parallel")
    i = pl.program_id(1)   # plane-block axis ("arbitrary", accumulating)

    @pl.when(i == 0)
    def _():
        si_ref[...] = jnp.zeros_like(si_ref)
        sx_ref[...] = jnp.zeros_like(sx_ref)
        st_ref[...] = jnp.zeros_like(st_ref)

    x = inp_ref[...].astype(jnp.float32)    # (tb, H*W) or (tb, H, W)
    t = tgt_ref[...].astype(jnp.float32)
    if with_logits:
        x = jax.nn.sigmoid(x)

    if needs_plane_mask:
        # Tail / duplicated blocks: zero planes whose global index is >= N.
        blk = c * steps_per_core + i         # intended (unclamped) block id
        plane = blk * tb + lax.broadcasted_iota(jnp.int32, x.shape, 0)
        pvalid = plane < n_planes
        x = jnp.where(pvalid, x, 0.0)
        t = jnp.where(pvalid, t, 0.0)

    # Hoisted boundary masks: one iota chain shared by all 8 pool taps.
    if flat:
        # Block is (tb, H*W): the whole plane lives on the lane axis.
        col = lax.broadcasted_iota(jnp.int32, t.shape, 1)
        colw = col & (W - 1)                 # W is a power of two on this path
        taps = ((1, -W, col >= W), (1, W, col < (H - 1) * W),
                (1, -1, colw >= 1), (1, 1, colw < W - 1))
        red_axes = (0,)
    else:
        # Block is (tb, H, W): H on sublanes, W on lanes.
        hpos = lax.broadcasted_iota(jnp.int32, t.shape, 1)
        wpos = lax.broadcasted_iota(jnp.int32, t.shape, 2)
        taps = ((1, -1, hpos >= 1), (1, 1, hpos < H - 1),
                (2, -1, wpos >= 1), (2, 1, wpos < W - 1))
        red_axes = (0, 1)

    # contour(t): min_pool = -maxpool(-t); max_min_pool = maxpool(min_pool)
    min_pool = _pool3(t, jnp.minimum, jnp.float32(jnp.inf), taps)
    max_min_pool = _pool3(min_pool, jnp.maximum, jnp.float32(-jnp.inf), taps)
    wgt = jnp.maximum(max_min_pool - min_pool, 0.0) * 2.0

    # Deferred reduction: collapse only the plane-batch (and sublane) axes per
    # step; the final cross-lane reduce happens once in the wrapper.
    si_ref[...] += jnp.sum(x * (t + wgt), axis=red_axes).reshape(si_ref.shape)
    sx_ref[...] += jnp.sum(x, axis=red_axes).reshape(sx_ref.shape)
    st_ref[...] += jnp.sum(t, axis=red_axes).reshape(st_ref.shape)


def contour_soft_dice_loss(inputs, targets, smooth=1.0, with_logits=True):
    B, C, H, W = inputs.shape
    n = B * C
    hw = H * W

    # Lane-dense layout when W is a small power of two; otherwise keep (H, W).
    flat = (W < _LANE) and (W & (W - 1) == 0)

    cap = max(1, _TARGET_BLOCK_ELEMS // hw)     # planes per block (VMEM budget)
    per_core = pl.cdiv(n, _NSPLIT)              # aim to give both cores work
    tb0 = min(cap, per_core)
    if flat:
        # Flattened blocks put the plane-batch on the sublane axis, so TB must
        # be a multiple of 8 or equal to the full plane count.
        if tb0 >= n:
            tb = n
        else:
            tb = (tb0 // 8) * 8
            if tb == 0:
                tb = min(n, 8)
    else:
        tb = max(1, tb0)

    nb = pl.cdiv(n, tb)                         # number of plane blocks
    nsplit = min(_NSPLIT, nb)                   # cores that get work
    steps = pl.cdiv(nb, nsplit)                 # blocks per core
    needs_clamp = nsplit * steps != nb          # some intended blocks >= nb
    needs_plane_mask = (n % tb != 0) or needs_clamp

    if flat:
        x = inputs.reshape(n, hw)
        t = targets.reshape(n, hw)
        blk_shape = (tb, hw)
        out_len = hw

        def in_idx(c, i):
            b = c * steps + i
            if needs_clamp:
                b = jnp.minimum(b, nb - 1)
            return (b, 0)
    else:
        x = inputs.reshape(n, H, W)
        t = targets.reshape(n, H, W)
        blk_shape = (tb, H, W)
        out_len = W

        def in_idx(c, i):
            b = c * steps + i
            if needs_clamp:
                b = jnp.minimum(b, nb - 1)
            return (b, 0, 0)

    kernel = functools.partial(
        _dice_sums_kernel, with_logits=with_logits, H=H, W=W, n_planes=n,
        tb=tb, steps_per_core=steps, flat=flat,
        needs_plane_mask=needs_plane_mask)

    part = jax.ShapeDtypeStruct((nsplit, 1, out_len), jnp.float32)
    out_spec = pl.BlockSpec((1, 1, out_len), lambda c, i: (c, 0, 0))

    si, sx, st = pl.pallas_call(
        kernel,
        out_shape=(part, part, part),
        grid_spec=pltpu.PrefetchScalarGridSpec(
            num_scalar_prefetch=0,
            grid=(nsplit, steps),
            in_specs=[pl.BlockSpec(blk_shape, in_idx),
                      pl.BlockSpec(blk_shape, in_idx)],
            out_specs=(out_spec, out_spec, out_spec),
        ),
        compiler_params=pltpu.CompilerParams(
            dimension_semantics=("parallel", "arbitrary"),
            vmem_limit_bytes=32 * 1024 * 1024),
    )(x, t)

    soft_intersection = jnp.sum(si)
    dice = (2.0 * soft_intersection + smooth) / (jnp.sum(sx) + jnp.sum(st) + smooth)
    return 1.0 - dice


# ---- pure-JAX reference (mirrors the PyTorch module) ----
def _maxpool3x3_nchw(x):
    return lax.reduce_window(
        x, -jnp.inf, lax.max,
        window_dimensions=(1, 1, 3, 3),
        window_strides=(1, 1, 1, 1),
        padding=((0, 0), (0, 0), (1, 1), (1, 1)))


def reference_loss(inputs, targets, smooth=1.0, with_logits=True):
    x = jax.nn.sigmoid(inputs) if with_logits else inputs
    min_pool = -_maxpool3x3_nchw(-targets)
    max_min_pool = _maxpool3x3_nchw(min_pool)
    w = jnp.maximum(max_min_pool - min_pool, 0.0) * 2.0
    si = jnp.sum(x * (targets + w))
    dice = (2.0 * si + smooth) / (jnp.sum(x) + jnp.sum(targets) + smooth)
    return 1.0 - dice


if __name__ == "__main__":
    key = jax.random.PRNGKey(0)

    cases = [
        ((2, 4, 16, 16), True),    # flat lane-dense path, single block
        ((3, 5, 16, 16), True),    # flat, partial tail block (plane mask)
        ((5, 8, 16, 16), False),   # flat, odd block count (clamped 2-way split)
        ((1, 2, 8, 128), True),    # (H, W) path, W >= 128
    ]
    for idx, (shape, with_logits) in enumerate(cases):
        k1, k2 = jax.random.split(jax.random.fold_in(key, idx))
        if with_logits:
            inp = jax.random.normal(k1, shape, dtype=jnp.float32)
        else:
            inp = jax.random.uniform(k1, shape, dtype=jnp.float32)
        tgt = (jax.random.uniform(k2, shape) > 0.5).astype(jnp.float32)

        loss_fn = jax.jit(functools.partial(contour_soft_dice_loss,
                                            with_logits=with_logits))
        loss = jax.block_until_ready(loss_fn(inp, tgt))
        ref = reference_loss(inp, tgt, with_logits=with_logits)
        assert jnp.allclose(loss, ref, atol=1e-5, rtol=1e-5), (
            shape, with_logits, float(loss), float(ref))

    print("KERNEL_OK")
</pallas_src>

<mosaic_0001>
module attributes {stable_mosaic.version = 11 : i64} {
  func.func @_dice_sums_kernel(%arg0: i32, %arg1: i32, %arg2: memref<8x256xf32, #tpu.memory_space<vmem>>, %arg3: memref<8x256xf32, #tpu.memory_space<vmem>>, %arg4: memref<1x1x256xf32, #tpu.memory_space<vmem>>, %arg5: memref<1x1x256xf32, #tpu.memory_space<vmem>>, %arg6: memref<1x1x256xf32, #tpu.memory_space<vmem>>) attributes {dimension_semantics = [#tpu.dimension_semantics<parallel>, #tpu.dimension_semantics<arbitrary>], iteration_bounds = array<i64: 1, 1>, scalar_prefetch = 0 : i64, scratch_operands = 0 : i64, tpu.core_type = #tpu.core_type<tc>, window_params = [{transform_indices = @transform_0, window_bounds = array<i64: 8, 256>}, {transform_indices = @transform_1, window_bounds = array<i64: 8, 256>}, {transform_indices = @transform_2, window_bounds = array<i64: 1, 1, 256>}, {transform_indices = @transform_3, window_bounds = array<i64: 1, 1, 256>}, {transform_indices = @transform_4, window_bounds = array<i64: 1, 1, 256>}]} {
    %c0_i32 = arith.constant 0 : i32
    %0 = arith.cmpi eq, %arg1, %c0_i32 : i32
    %1 = arith.extui %0 : i1 to i32
    %c0_i32_0 = arith.constant 0 : i32
    %2 = arith.cmpi ne, %1, %c0_i32_0 : i32
    scf.if %2 {
      %cst_43 = arith.constant 0.000000e+00 : f32
      %75 = vector.broadcast %cst_43 : f32 to vector<1x1x256xf32>
      %c0_44 = arith.constant 0 : index
      %c0_45 = arith.constant 0 : index
      %c0_46 = arith.constant 0 : index
      %76 = vector.load %arg4[%c0_44, %c0_45, %c0_46] : memref<1x1x256xf32, #tpu.memory_space<vmem>>, vector<1x1x256xf32>
      tpu.vector_store %arg4[%c0_44, %c0_45, %c0_46], %75 {strides = array<i32>} : memref<1x1x256xf32, #tpu.memory_space<vmem>>, vector<1x1x256xf32>,
      %cst_47 = arith.constant 0.000000e+00 : f32
      %77 = vector.broadcast %cst_47 : f32 to vector<1x1x256xf32>
      %c0_48 = arith.constant 0 : index
      %c0_49 = arith.constant 0 : index
      %c0_50 = arith.constant 0 : index
      %78 = vector.load %arg5[%c0_48, %c0_49, %c0_50] : memref<1x1x256xf32, #tpu.memory_space<vmem>>, vector<1x1x256xf32>
      tpu.vector_store %arg5[%c0_48, %c0_49, %c0_50], %77 {strides = array<i32>} : memref<1x1x256xf32, #tpu.memory_space<vmem>>, vector<1x1x256xf32>,
      %cst_51 = arith.constant 0.000000e+00 : f32
      %79 = vector.broadcast %cst_51 : f32 to vector<1x1x256xf32>
      %c0_52 = arith.constant 0 : index
      %c0_53 = arith.constant 0 : index
      %c0_54 = arith.constant 0 : index
      %80 = vector.load %arg6[%c0_52, %c0_53, %c0_54] : memref<1x1x256xf32, #tpu.memory_space<vmem>>, vector<1x1x256xf32>
      tpu.vector_store %arg6[%c0_52, %c0_53, %c0_54], %79 {strides = array<i32>} : memref<1x1x256xf32, #tpu.memory_space<vmem>>, vector<1x1x256xf32>,
    } else {
    }
    %c0 = arith.constant 0 : index
    %c0_1 = arith.constant 0 : index
    %3 = vector.load %arg2[%c0, %c0_1] : memref<8x256xf32, #tpu.memory_space<vmem>>, vector<8x256xf32>
    %c0_2 = arith.constant 0 : index
    %c0_3 = arith.constant 0 : index
    %4 = vector.load %arg3[%c0_2, %c0_3] : memref<8x256xf32, #tpu.memory_space<vmem>>, vector<8x256xf32>
    %5 = arith.negf %3 : vector<8x256xf32>
    %6 = math.exp %5 : vector<8x256xf32>
    %cst = arith.constant 1.000000e+00 : f32
    %7 = vector.broadcast %cst : f32 to vector<8x256xf32>
    %8 = arith.addf %7, %6 : vector<8x256xf32>
    %9 = arith.divf %7, %8 : vector<8x256xf32>
    %10 = tpu.iota {dimensions = array<i32: 1>} : vector<8x256xi32>
    %c15_i32 = arith.constant 15 : i32
    %11 = vector.broadcast %c15_i32 : i32 to vector<8x256xi32>
    %12 = arith.andi %10, %11 : vector<8x256xi32>
    %c16_i32 = arith.constant 16 : i32
    %13 = vector.broadcast %c16_i32 : i32 to vector<8x256xi32>
    %14 = arith.cmpi sge, %10, %13 : vector<8x256xi32>
    %c240_i32 = arith.constant 240 : i32
    %15 = vector.broadcast %c240_i32 : i32 to vector<8x256xi32>
    %16 = arith.cmpi slt, %10, %15 : vector<8x256xi32>
    %c1_i32 = arith.constant 1 : i32
    %17 = vector.broadcast %c1_i32 : i32 to vector<8x256xi32>
    %18 = arith.cmpi sge, %12, %17 : vector<8x256xi32>
    %c15_i32_4 = arith.constant 15 : i32
    %19 = vector.broadcast %c15_i32_4 : i32 to vector<8x256xi32>
    %20 = arith.cmpi slt, %12, %19 : vector<8x256xi32>
    %c16_i32_5 = arith.constant 16 : i32
    %21 = tpu.dynamic_rotate %4 by %c16_i32_5 dim 1 : vector<8x256xf32>, i32 -> vector<8x256xf32>
    %cst_6 = arith.constant 0x7F800000 : f32
    %22 = vector.broadcast %cst_6 : f32 to vector<8x256xf32>
    %23 = arith.select %14, %21, %22 : vector<8x256xi1>, vector<8x256xf32>
    %24 = arith.minimumf %4, %23 : vector<8x256xf32>
    %c240_i32_7 = arith.constant 240 : i32
    %25 = tpu.dynamic_rotate %4 by %c240_i32_7 dim 1 : vector<8x256xf32>, i32 -> vector<8x256xf32>
    %cst_8 = arith.constant 0x7F800000 : f32
    %26 = vector.broadcast %cst_8 : f32 to vector<8x256xf32>
    %27 = arith.select %16, %25, %26 : vector<8x256xi1>, vector<8x256xf32>
    %28 = arith.minimumf %24, %27 : vector<8x256xf32>
    %c1_i32_9 = arith.constant 1 : i32
    %29 = tpu.dynamic_rotate %28 by %c1_i32_9 dim 1 : vector<8x256xf32>, i32 -> vector<8x256xf32>
    %cst_10 = arith.constant 0x7F800000 : f32
    %30 = vector.broadcast %cst_10 : f32 to vector<8x256xf32>
    %31 = arith.select %18, %29, %30 : vector<8x256xi1>, vector<8x256xf32>
    %32 = arith.minimumf %28, %31 : vector<8x256xf32>
    %c255_i32 = arith.constant 255 : i32
    %33 = tpu.dynamic_rotate %28 by %c255_i32 dim 1 : vector<8x256xf32>, i32 -> vector<8x256xf32>
    %cst_11 = arith.constant 0x7F800000 : f32
    %34 = vector.broadcast %cst_11 : f32 to vector<8x256xf32>
    %35 = arith.select %20, %33, %34 : vector<8x256xi1>, vector<8x256xf32>
    %36 = arith.minimumf %32, %35 : vector<8x256xf32>
    %c16_i32_12 = arith.constant 16 : i32
    %37 = tpu.dynamic_rotate %36 by %c16_i32_12 dim 1 : vector<8x256xf32>, i32 -> vector<8x256xf32>
    %cst_13 = arith.constant 0xFF800000 : f32
    %38 = vector.broadcast %cst_13 : f32 to vector<8x256xf32>
    %39 = arith.select %14, %37, %38 : vector<8x256xi1>, vector<8x256xf32>
    %40 = arith.maximumf %36, %39 : vector<8x256xf32>
    %c240_i32_14 = arith.constant 240 : i32
    %41 = tpu.dynamic_rotate %36 by %c240_i32_14 dim 1 : vector<8x256xf32>, i32 -> vector<8x256xf32>
    %cst_15 = arith.constant 0xFF800000 : f32
    %42 = vector.broadcast %cst_15 : f32 to vector<8x256xf32>
    %43 = arith.select %16, %41, %42 : vector<8x256xi1>, vector<8x256xf32>
    %44 = arith.maximumf %40, %43 : vector<8x256xf32>
    %c1_i32_16 = arith.constant 1 : i32
    %45 = tpu.dynamic_rotate %44 by %c1_i32_16 dim 1 : vector<8x256xf32>, i32 -> vector<8x256xf32>
    %cst_17 = arith.constant 0xFF800000 : f32
    %46 = vector.broadcast %cst_17 : f32 to vector<8x256xf32>
    %47 = arith.select %18, %45, %46 : vector<8x256xi1>, vector<8x256xf32>
    %48 = arith.maximumf %44, %47 : vector<8x256xf32>
    %c255_i32_18 = arith.constant 255 : i32
    %49 = tpu.dynamic_rotate %44 by %c255_i32_18 dim 1 : vector<8x256xf32>, i32 -> vector<8x256xf32>
    %cst_19 = arith.constant 0xFF800000 : f32
    %50 = vector.broadcast %cst_19 : f32 to vector<8x256xf32>
    %51 = arith.select %20, %49, %50 : vector<8x256xi1>, vector<8x256xf32>
    %52 = arith.maximumf %48, %51 : vector<8x256xf32>
    %53 = arith.subf %52, %36 : vector<8x256xf32>
    %cst_20 = arith.constant 0.000000e+00 : f32
    %54 = vector.broadcast %cst_20 : f32 to vector<8x256xf32>
    %55 = arith.maximumf %53, %54 : vector<8x256xf32>
    %cst_21 = arith.constant 2.000000e+00 : f32
    %56 = vector.broadcast %cst_21 : f32 to vector<8x256xf32>
    %57 = arith.mulf %55, %56 : vector<8x256xf32>
    %c0_22 = arith.constant 0 : index
    %c0_23 = arith.constant 0 : index
    %c0_24 = arith.constant 0 : index
    %58 = vector.load %arg4[%c0_22, %c0_23, %c0_24] : memref<1x1x256xf32, #tpu.memory_space<vmem>>, vector<1x1x256xf32>
    %59 = arith.addf %4, %57 : vector<8x256xf32>
    %60 = arith.mulf %9, %59 : vector<8x256xf32>
    %cst_25 = arith.constant dense<0.000000e+00> : vector<256xf32>
    %61 = vector.multi_reduction <add>, %60, %cst_25 [0] : vector<8x256xf32> to vector<256xf32>
    %62 = vector.shape_cast %61 : vector<256xf32> to vector<1x1x256xf32>
    %63 = arith.addf %58, %62 : vector<1x1x256xf32>
    %c0_26 = arith.constant 0 : index
    %c0_27 = arith.constant 0 : index
    %c0_28 = arith.constant 0 : index
    %64 = vector.load %arg4[%c0_26, %c0_27, %c0_28] : memref<1x1x256xf32, #tpu.memory_space<vmem>>, vector<1x1x256xf32>
    tpu.vector_store %arg4[%c0_26, %c0_27, %c0_28], %63 {strides = array<i32>} : memref<1x1x256xf32, #tpu.memory_space<vmem>>, vector<1x1x256xf32>,
    %c0_29 = arith.constant 0 : index
    %c0_30 = arith.constant 0 : index
    %c0_31 = arith.constant 0 : index
    %65 = vector.load %arg5[%c0_29, %c0_30, %c0_31] : memref<1x1x256xf32, #tpu.memory_space<vmem>>, vector<1x1x256xf32>
    %cst_32 = arith.constant dense<0.000000e+00> : vector<256xf32>
    %66 = vector.multi_reduction <add>, %9, %cst_32 [0] : vector<8x256xf32> to vector<256xf32>
    %67 = vector.shape_cast %66 : vector<256xf32> to vector<1x1x256xf32>
    %68 = arith.addf %65, %67 : vector<1x1x256xf32>
    %c0_33 = arith.constant 0 : index
    %c0_34 = arith.constant 0 : index
    %c0_35 = arith.constant 0 : index
    %69 = vector.load %arg5[%c0_33, %c0_34, %c0_35] : memref<1x1x256xf32, #tpu.memory_space<vmem>>, vector<1x1x256xf32>
    tpu.vector_store %arg5[%c0_33, %c0_34, %c0_35], %68 {strides = array<i32>} : memref<1x1x256xf32, #tpu.memory_space<vmem>>, vector<1x1x256xf32>,
    %c0_36 = arith.constant 0 : index
    %c0_37 = arith.constant 0 : index
    %c0_38 = arith.constant 0 : index
    %70 = vector.load %arg6[%c0_36, %c0_37, %c0_38] : memref<1x1x256xf32, #tpu.memory_space<vmem>>, vector<1x1x256xf32>
    %cst_39 = arith.constant dense<0.000000e+00> : vector<256xf32>
    %71 = vector.multi_reduction <add>, %4, %cst_39 [0] : vector<8x256xf32> to vector<256xf32>
    %72 = vector.shape_cast %71 : vector<256xf32> to vector<1x1x256xf32>
    %73 = arith.addf %70, %72 : vector<1x1x256xf32>
    %c0_40 = arith.constant 0 : index
    %c0_41 = arith.constant 0 : index
    %c0_42 = arith.constant 0 : index
    %74 = vector.load %arg6[%c0_40, %c0_41, %c0_42] : memref<1x1x256xf32, #tpu.memory_space<vmem>>, vector<1x1x256xf32>
    tpu.vector_store %arg6[%c0_40, %c0_41, %c0_42], %73 {strides = array<i32>} : memref<1x1x256xf32, #tpu.memory_space<vmem>>, vector<1x1x256xf32>,
    return
  }
  func.func @transform_0(%arg0: i32, %arg1: i32) -> (i32, i32) {
    %c1_i32 = arith.constant 1 : i32
    %0 = arith.muli %arg0, %c1_i32 : i32
    %1 = arith.addi %0, %arg1 : i32
    %c0_i32 = arith.constant 0 : i32
    %c0_i32_0 = arith.constant 0 : i32
    return %1, %c0_i32 : i32, i32
  }
  func.func @transform_1(%arg0: i32, %arg1: i32) -> (i32, i32) {
    %c1_i32 = arith.constant 1 : i32
    %0 = arith.muli %arg0, %c1_i32 : i32
    %1 = arith.addi %0, %arg1 : i32
    %c0_i32 = arith.constant 0 : i32
    %c0_i32_0 = arith.constant 0 : i32
    return %1, %c0_i32 : i32, i32
  }
  func.func @transform_2(%arg0: i32, %arg1: i32) -> (i32, i32, i32) {
    %c0_i32 = arith.constant 0 : i32
    %c0_i32_0 = arith.constant 0 : i32
    %c0_i32_1 = arith.constant 0 : i32
    return %arg0, %c0_i32, %c0_i32_0 : i32, i32, i32
  }
  func.func @transform_3(%arg0: i32, %arg1: i32) -> (i32, i32, i32) {
    %c0_i32 = arith.constant 0 : i32
    %c0_i32_0 = arith.constant 0 : i32
    %c0_i32_1 = arith.constant 0 : i32
    return %arg0, %c0_i32, %c0_i32_0 : i32, i32, i32
  }
  func.func @transform_4(%arg0: i32, %arg1: i32) -> (i32, i32, i32) {
    %c0_i32 = arith.constant 0 : i32
    %c0_i32_0 = arith.constant 0 : i32
    %c0_i32_1 = arith.constant 0 : i32
    return %arg0, %c0_i32, %c0_i32_0 : i32, i32, i32
  }
}

</mosaic_0001>

<llo_original>
// kernel: contour_soft_dice_loss.1
$region0: #{contour_soft_dice_loss.1}
  #allocation0 [shape = 'u32[]', space=smem, size = 0x4, offset = 0x4, fixed_abs, tag = 'smem constant byte address 0x4 - core index']
  #allocation1 [shape = 'u32[144,128]{1,0:T(1,128)}', space=vmem, size = 0x12000, scoped, tag = 'internal scratch']
  %s0 = inlined_call_operand.vmem [shape: f32[8,256], index: 0, kind: input, shape index: {}]
  %s1 = inlined_call_operand.vmem [shape: f32[8,256], index: 1, kind: input, shape index: {}]
  %s2 = inlined_call_operand.vmem [shape: f32[1,1,256], index: 2, kind: output, shape index: {0}]
  %s3 = inlined_call_operand.vmem [shape: f32[1,1,256], index: 3, kind: output, shape index: {1}]
  %s4 = inlined_call_operand.vmem [shape: f32[1,1,256], index: 4, kind: output, shape index: {2}]
  %5 = xla_tuple %s2, %s3, %s4
  %s6 = sld [smem:[#allocation0]]
  $region38: #{contour_soft_dice_loss.1} parent=0
    _
  %s8 = ssub.s32 1, %s6
  %s9 = scalar_select 0, %s8, %s6
  // Predicated region
  $region2: #{contour_soft_dice_loss.1} parent=0 // pred_check
    _
  $region3: #{contour_soft_dice_loss.1} parent=0 // pred_check_branch
    %11 = sbr.rel (0) target = $region5
  $region4: #{contour_soft_dice_loss.1} parent=0 // pred_region
    %s12 = sadd.s32 0, 0
    %p13 = scmp.lt.s32.totalorder %s12, 0
    %s14 = scalar_select %p13, %s12, 0
    %s15 = smul.addr %s14, 2
    %s16 = smul.addr %s15, 8
    %s17 = scalar_lea.vmem %s0, %s16
    %s18 = sadd.s32 0, 0
  $region5: #{contour_soft_dice_loss.1} parent=0 // pred_fallthru
    _
  // Predicated region
  $region6: #{contour_soft_dice_loss.1} parent=0 // pred_check
    _
  $region7: #{contour_soft_dice_loss.1} parent=0 // pred_check_branch
    %20 = sbr.rel (0) target = $region9
  $region8: #{contour_soft_dice_loss.1} parent=0 // pred_region
    %s21 = sadd.s32 0, 0
    %p22 = scmp.lt.s32.totalorder %s21, 0
    %s23 = scalar_select %p22, %s21, 0
    %s24 = smul.addr %s23, 2
    %s25 = smul.addr %s24, 8
    %s26 = scalar_lea.vmem %s1, %s25
    %s27 = sadd.s32 0, 0
  $region9: #{contour_soft_dice_loss.1} parent=0 // pred_fallthru
    _
  %s28 = sadd.s32 0, 0
  %p29 = scmp.lt.s32.totalorder %s28, 0
  %s30 = scalar_select %p29, %s28, 0
  %s31 = smul.addr %s30, 2
  %s32 = smul.addr %s31, 8
  %s33 = scalar_lea.vmem %s0, %s32
  %s34 = sadd.s32 0, 0
  %p35 = scmp.lt.s32.totalorder %s34, 0
  %s36 = scalar_select %p35, %s34, 0
  %s37 = smul.addr %s36, 2
  %s38 = smul.addr %s37, 8
  %s39 = scalar_lea.vmem %s1, %s38
  %s40 = sadd.s32 0, 0
  %p41 = scmp.lt.s32.totalorder %s40, 0
  %s42 = scalar_select %p41, %s40, 0
  %s43 = smul.addr %s42, 2
  %s44 = smul.addr %s43, 8
  %s45 = scalar_lea.vmem %s0, %s44
  %s46 = sadd.s32 0, 0
  %s47 = sadd.s32 0, 0
  %p48 = scmp.lt.s32.totalorder %s47, 0
  %s49 = scalar_select %p48, %s47, 0
  %s50 = smul.addr %s49, 2
  %s51 = smul.addr %s50, 8
  %s52 = scalar_lea.vmem %s1, %s51
  %s53 = sadd.s32 0, 0
  %p54 = scmp.eq.s32.totalorder 0, 0
  // Predicated region
  $region10: #{contour_soft_dice_loss.1} parent=0 // pred_check
    %p55 = pneg %p54
  $region11: #{contour_soft_dice_loss.1} parent=0 // pred_check_branch
    %57 = sbr.rel (%p55) target = $region13
  $region12: #{contour_soft_dice_loss.1} parent=0 // pred_region
    %v58 = vlaneseq
    %vm59 = vcmp.ge.s32.totalorder %v58, 0
    %vm60 = vcmp.lt.s32.totalorder %v58, 256
    %vm61 = vmand %vm59, %vm60
    %62 = vst.msk [vmem:[%s2] sm:$0x3] %vm61, 0.0
    %63 = vst.msk [vmem:[%s3] sm:$0x3] %vm61, 0.0
    %64 = vst.msk [vmem:[%s4] sm:$0x3] %vm61, 0.0
  $region13: #{contour_soft_dice_loss.1} parent=0 // pred_fallthru
    _
  %v65 = vld [vmem:[%s45] sm:$0xff]
  %v66 = vld [vmem:[%s45 + $0x8] sm:$0xff]
  %v67 = vld [vmem:[%s52] sm:$0xff]
  %v68 = vld [vmem:[%s52 + $0x8] sm:$0xff]
  %v69 = vxor.u32 %v65, 2147483648
  %v70 = vxor.u32 %v66, 2147483648
  %v71 = vmul.f32 %v69, 1.442695
  %v72 = vpow.pop %v71
  %v73 = vmul.f32 %v70, 1.442695
  %v74 = vpow.pop %v73
  %v75 = vadd.f32 %v72, 1.0
  %v76 = vadd.f32 %v74, 1.0
  %v77 = vrcp.pop %v75
  %v78 = vmul.f32 1.0, %v77
  %v79 = vrcp.pop %v76
  %v80 = vmul.f32 1.0, %v79
  %v81 = vlaneseq
  %v82 = vand.u32 %v81, 127
  %v83 = vadd.s32 %v82, 128
  %v84 = vand.u32 %v82, 15
  %v85 = vand.u32 %v83, 15
  %vm86 = vcmp.ge.s32.totalorder %v82, 16
  %vm87 = vcmp.ge.s32.totalorder %v83, 16
  %vm88 = vcmp.lt.s32.totalorder %v82, 240
  %vm89 = vcmp.lt.s32.totalorder %v83, 240
  %vm90 = vcmp.ge.s32.totalorder %v84, 1
  %vm91 = vcmp.ge.s32.totalorder %v85, 1
  %vm92 = vcmp.lt.s32.totalorder %v84, 15
  %vm93 = vcmp.lt.s32.totalorder %v85, 15
  %94 = vrot.lane.b32.xlu0 %v67, 16
  %v95 = vpop.permute.xlu0 %94
  %96 = vrot.lane.b32.xlu0 %v68, 16
  %v97 = vpop.permute.xlu0 %96
  %vm98 = vcmp.lt.s32.totalorder %v82, 16
  %v99 = vsel %vm98, %v95, %v97
  %v100 = vsel %vm98, %v97, %v95
  %v101 = vsel %vm86, %v100, inf
  %v102 = vsel %vm87, %v99, inf
  %v103 = vmin.f32 %v67, %v101
  %v104 = vmin.f32 %v68, %v102
  %105 = vrot.lane.b32.xlu0 %v67, 112
  %v106 = vpop.permute.xlu0 %105
  %107 = vrot.lane.b32.xlu0 %v68, 112
  %v108 = vpop.permute.xlu0 %107
  %vm109 = vcmp.lt.s32.totalorder %v82, 112
  %v110 = vsel %vm109, %v106, %v108
  %v111 = vsel %vm109, %v108, %v106
  %v112 = vsel %vm88, %v110, inf
  %v113 = vsel %vm89, %v111, inf
  %v114 = vmin.f32 %v103, %v112
  %v115 = vmin.f32 %v104, %v113
  %116 = vrot.lane.b32.xlu0 %v114, 1
  %v117 = vpop.permute.xlu0 %116
  %118 = vrot.lane.b32.xlu0 %v115, 1
  %v119 = vpop.permute.xlu0 %118
  %vm120 = vcmp.lt.s32.totalorder %v82, 1
  %v121 = vsel %vm120, %v117, %v119
  %v122 = vsel %vm120, %v119, %v117
  %v123 = vsel %vm90, %v122, inf
  %v124 = vsel %vm91, %v121, inf
  %v125 = vmin.f32 %v114, %v123
  %v126 = vmin.f32 %v115, %v124
  %127 = vrot.lane.b32.xlu0 %v114, 127
  %v128 = vpop.permute.xlu0 %127
  %129 = vrot.lane.b32.xlu0 %v115, 127
  %v130 = vpop.permute.xlu0 %129
  %vm131 = vcmp.lt.s32.totalorder %v82, 127
  %v132 = vsel %vm131, %v128, %v130
  %v133 = vsel %vm131, %v130, %v128
  %v134 = vsel %vm92, %v132, inf
  %v135 = vsel %vm93, %v133, inf
  %v136 = vmin.f32 %v125, %v134
  %v137 = vmin.f32 %v126, %v135
  %138 = vrot.lane.b32.xlu0 %v136, 16
  %v139 = vpop.permute.xlu0 %138
  %140 = vrot.lane.b32.xlu0 %v137, 16
  %v141 = vpop.permute.xlu0 %140
  %v142 = vsel %vm98, %v139, %v141
  %v143 = vsel %vm98, %v141, %v139
  %v144 = vsel %vm86, %v143, -inf
  %v145 = vsel %vm87, %v142, -inf
  %v146 = vmax.f32 %v136, %v144
  %v147 = vmax.f32 %v137, %v145
  %148 = vrot.lane.b32.xlu0 %v136, 112
  %v149 = vpop.permute.xlu0 %148
  %150 = vrot.lane.b32.xlu0 %v137, 112
  %v151 = vpop.permute.xlu0 %150
  %v152 = vsel %vm109, %v149, %v151
  %v153 = vsel %vm109, %v151, %v149
  %v154 = vsel %vm88, %v152, -inf
  %v155 = vsel %vm89, %v153, -inf
  %v156 = vmax.f32 %v146, %v154
  %v157 = vmax.f32 %v147, %v155
  %158 = vrot.lane.b32.xlu0 %v156, 1
  %v159 = vpop.permute.xlu0 %158
  %160 = vrot.lane.b32.xlu0 %v157, 1
  %v161 = vpop.permute.xlu0 %160
  %v162 = vsel %vm120, %v159, %v161
  %v163 = vsel %vm120, %v161, %v159
  %v164 = vsel %vm90, %v163, -inf
  %v165 = vsel %vm91, %v162, -inf
  %v166 = vmax.f32 %v156, %v164
  %v167 = vmax.f32 %v157, %v165
  %168 = vrot.lane.b32.xlu0 %v156, 127
  %v169 = vpop.permute.xlu0 %168
  %170 = vrot.lane.b32.xlu0 %v157, 127
  %v171 = vpop.permute.xlu0 %170
  %v172 = vsel %vm131, %v169, %v171
  %v173 = vsel %vm131, %v171, %v169
  %v174 = vsel %vm92, %v172, -inf
  %v175 = vsel %vm93, %v173, -inf
  %v176 = vmax.f32 %v166, %v174
  %v177 = vmax.f32 %v167, %v175
  %v178 = vsub.f32 %v176, %v136
  %v179 = vsub.f32 %v177, %v137
  %v180 = vmax.f32 %v178, 0.0
  %v181 = vmax.f32 %v179, 0.0
  %v182 = vmul.f32 %v180, 2.0
  %v183 = vmul.f32 %v181, 2.0
  %v184 = vld [vmem:[%s2] sm:$0x3]
  %v185 = vadd.f32 %v67, %v182
  %v186 = vadd.f32 %v68, %v183
  %v187 = vmul.f32 %v78, %v185
  %v188 = vmul.f32 %v80, %v186
  %v189 = vrot.slane %v187, 4
  %v190 = vadd.f32 %v187, %v189
  %v191 = vrot.slane %v190, 2
  %v192 = vadd.f32 %v190, %v191
  %v193 = vrot.slane %v192, 1
  %v194 = vadd.f32 %v192, %v193
  %v195 = vrot.slane %v188, 4
  %v196 = vadd.f32 %v188, %v195
  %v197 = vrot.slane %v196, 2
  %v198 = vadd.f32 %v196, %v197
  %v199 = vrot.slane %v198, 1
  %v200 = vadd.f32 %v198, %v199
  %v203 = vcombine.low %v194, %v200
  %v205 = vunpack.c.l.s4 1966171168
  %v206 = vunpack.c.0.s8 %v205
  %v207 = vlaneseq
  %v208 = vshrl.u32 %v207, 7
  %v209 = vsub.s32 %v206, %v208
  %v210 = vrot.slane %v203, %v209
  %v212 = vunpack.c.l.s4 1966171168
  %v213 = vunpack.c.0.s8 %v212
  %v214 = vlaneseq
  %v215 = vshrl.u32 %v214, 7
  %v216 = vsub.s32 %v213, %v215
  %v217 = vrot.slane %v210, %v216
  %v219 = vadd.f32 %v184, %v217
  %v220 = vlaneseq
  %vm221 = vcmp.ge.s32.totalorder %v220, 0
  %vm222 = vcmp.lt.s32.totalorder %v220, 256
  %vm223 = vmand %vm221, %vm222
  %224 = vst.msk [vmem:[%s2] sm:$0x3] %vm223, %v219
  %v225 = vld [vmem:[%s3] sm:$0x3]
  %v226 = vrot.slane %v78, 4
  %v227 = vadd.f32 %v78, %v226
  %v228 = vrot.slane %v227, 2
  %v229 = vadd.f32 %v227, %v228
  %v230 = vrot.slane %v229, 1
  %v231 = vadd.f32 %v229, %v230
  %v232 = vrot.slane %v80, 4
  %v233 = vadd.f32 %v80, %v232
  %v234 = vrot.slane %v233, 2
  %v235 = vadd.f32 %v233, %v234
  %v236 = vrot.slane %v235, 1
  %v237 = vadd.f32 %v235, %v236
  %v240 = vcombine.low %v231, %v237
  %v242 = vunpack.c.l.s4 1966171168
  %v243 = vunpack.c.0.s8 %v242
  %v244 = vlaneseq
  %v245 = vshrl.u32 %v244, 7
  %v246 = vsub.s32 %v243, %v245
  %v247 = vrot.slane %v240, %v246
  %v249 = vunpack.c.l.s4 1966171168
  %v250 = vunpack.c.0.s8 %v249
  %v251 = vlaneseq
  %v252 = vshrl.u32 %v251, 7
  %v253 = vsub.s32 %v250, %v252
  %v254 = vrot.slane %v247, %v253
  %v256 = vadd.f32 %v225, %v254
  %257 = vst.msk [vmem:[%s3] sm:$0x3] %vm223, %v256
  %v258 = vld [vmem:[%s4] sm:$0x3]
  %v259 = vrot.slane %v67, 4
  %v260 = vadd.f32 %v67, %v259
  %v261 = vrot.slane %v260, 2
  %v262 = vadd.f32 %v260, %v261
  %v263 = vrot.slane %v262, 1
  %v264 = vadd.f32 %v262, %v263
  %v265 = vrot.slane %v68, 4
  %v266 = vadd.f32 %v68, %v265
  %v267 = vrot.slane %v266, 2
  %v268 = vadd.f32 %v266, %v267
  %v269 = vrot.slane %v268, 1
  %v270 = vadd.f32 %v268, %v269
  %v273 = vcombine.low %v264, %v270
  %v275 = vunpack.c.l.s4 1966171168
  %v276 = vunpack.c.0.s8 %v275
  %v277 = vlaneseq
  %v278 = vshrl.u32 %v277, 7
  %v279 = vsub.s32 %v276, %v278
  %v280 = vrot.slane %v273, %v279
  %v282 = vunpack.c.l.s4 1966171168
  %v283 = vunpack.c.0.s8 %v282
  %v284 = vlaneseq
  %v285 = vshrl.u32 %v284, 7
  %v286 = vsub.s32 %v283, %v285
  %v287 = vrot.slane %v280, %v286
  %v289 = vadd.f32 %v258, %v287
  %290 = vst.msk [vmem:[%s4] sm:$0x3] %vm223, %v289
  // Predicated region
  $region14: #{contour_soft_dice_loss.1} parent=0 // pred_check
    _
  $region15: #{contour_soft_dice_loss.1} parent=0 // pred_check_branch
    %292 = sbr.rel (0) target = $region17
  $region16: #{contour_soft_dice_loss.1} parent=0 // pred_region
    _
  $region17: #{contour_soft_dice_loss.1} parent=0 // pred_fallthru
    _
  // Predicated region
  $region18: #{contour_soft_dice_loss.1} parent=0 // pred_check
    _
  $region19: #{contour_soft_dice_loss.1} parent=0 // pred_check_branch
    %294 = sbr.rel (0) target = $region21
  $region20: #{contour_soft_dice_loss.1} parent=0 // pred_region
    _
  $region21: #{contour_soft_dice_loss.1} parent=0 // pred_fallthru
    _
  // Predicated region
  $region22: #{contour_soft_dice_loss.1} parent=0 // pred_check
    _
  $region23: #{contour_soft_dice_loss.1} parent=0 // pred_check_branch
    %296 = sbr.rel (0) target = $region25
  $region24: #{contour_soft_dice_loss.1} parent=0 // pred_region
    _
  $region25: #{contour_soft_dice_loss.1} parent=0 // pred_fallthru
    _
  // Predicated region
  $region26: #{contour_soft_dice_loss.1} parent=0 // pred_check
    _
  $region27: #{contour_soft_dice_loss.1} parent=0 // pred_check_branch
    %298 = sbr.rel (0) target = $region29
  $region28: #{contour_soft_dice_loss.1} parent=0 // pred_region
    _
  $region29: #{contour_soft_dice_loss.1} parent=0 // pred_fallthru
    _
  // Predicated region
  $region30: #{contour_soft_dice_loss.1} parent=0 // pred_check
    _
  $region31: #{contour_soft_dice_loss.1} parent=0 // pred_check_branch
    %300 = sbr.rel (0) target = $region33
  $region32: #{contour_soft_dice_loss.1} parent=0 // pred_region
    _
  $region33: #{contour_soft_dice_loss.1} parent=0 // pred_fallthru
    _
  // Predicated region
  $region34: #{contour_soft_dice_loss.1} parent=0 // pred_check
    _
  $region35: #{contour_soft_dice_loss.1} parent=0 // pred_check_branch
    %302 = sbr.rel (0) target = $region37
  $region36: #{contour_soft_dice_loss.1} parent=0 // pred_region
    _
  $region37: #{contour_soft_dice_loss.1} parent=0 // pred_fallthru
    _

</llo_original>
